<compile_context>
chip_gen: v7x
topology: tpu7x:2x2x1
jax: 0.10.0
libtpu: 0.0.40
codegen_flags: <defaults>
</compile_context>

<pallas_src>
import functools

import jax
import jax.numpy as jnp
from jax import lax
from jax.experimental import pallas as pl
from jax.experimental.pallas import tpu as pltpu


def _round_up(x, m):
    return (x + m - 1) // m * m


def _auto_row_tile(H, Wp, Cin, Cout, K, in_itemsize, out_itemsize,
                   budget_bytes=4 * 1024 * 1024):
    """Rows per tile so that (double-buffered blocks + im2col scratch) ~ 4 MiB."""
    per_row = Wp * (2 * Cin * in_itemsize          # input block, 2 buffers
                    + 2 * Cout * out_itemsize      # output block, 2 buffers
                    + K * K * Cin * in_itemsize)   # im2col scratch
    return int(max(1, min(H, budget_bytes // max(per_row, 1))))


def _swconv_kernel(x_ref, w_ref, b_ref, o_ref, col_ref, *, K, Wp, Lout):
    """One (batch, row-tile) grid step.

    x_ref:   (1, 1, Cin, Lin)     flattened, padded input row-tile (VMEM)
    w_ref:   (Cout, K*K*Cin)      im2col-ordered weights (VMEM)
    b_ref:   (Cout, 1)            bias, f32 (VMEM)
    o_ref:   (1, 1, Cout, Lout)   flattened output row-tile (VMEM, lane-dense)
    col_ref: (K*K*Cin, Lout)      im2col scratch (VMEM)
    """
    cin = x_ref.shape[2]
    # Materialize im2col once: tap (kh, kw) is a constant flat shift of
    # kh*Wp + kw in the row-major padded layout -> pure lane-shifted slices.
    for kh in range(K):
        for kw in range(K):
            off = kh * Wp + kw
            t = kh * K + kw
            col_ref[t * cin:(t + 1) * cin, :] = x_ref[0, 0, :, off:off + Lout]

    # Single fused contraction over K*K*Cin on the MXU, f32 accumulation.
    acc = jnp.dot(w_ref[...], col_ref[...], preferred_element_type=jnp.float32)
    acc = acc + b_ref[...].astype(jnp.float32)     # (Cout, 1) -> (Cout, Lout)
    o_ref[0, 0] = acc.astype(o_ref.dtype)


@functools.partial(jax.jit,
                   static_argnames=("kernel_size", "compute_dtype", "row_tile"))
def swconv_pallas(x_nchw, weight, bias, *, kernel_size,
                  compute_dtype=jnp.float32, row_tile=None):
    """Forward of SWConv.

    x_nchw : (N, Cin, H, W)
    weight : (Cout, Cin, K, K)
    bias   : (Cout,)
    Returns (N, Cout, H, W)  ('same' padding).
    """
    assert kernel_size % 2 == 1, "SWConv requires an odd kernel_size"
    K = kernel_size
    r = K // 2
    N, Cin, H, W = x_nchw.shape
    Cout = weight.shape[0]
    Wp = W + 2 * r
    out_dtype = x_nchw.dtype
    in_itemsize = jnp.dtype(compute_dtype).itemsize
    out_itemsize = jnp.dtype(out_dtype).itemsize

    if row_tile is None:
        row_tile = _auto_row_tile(H, Wp, Cin, Cout, K, in_itemsize, out_itemsize)
    TH = int(min(row_tile, H))
    n_tiles = -(-H // TH)
    H_pad = n_tiles * TH

    max_off = 2 * r * Wp + 2 * r            # largest flat tap shift
    Lout = _round_up(TH * Wp, 128)          # lane-dense output width
    Lin = _round_up(Lout + max_off, 128)    # input width (covers all taps)

    # One fused XLA pass: zero-pad + haloed row tiling + flatten.  No
    # NCHW<->NHWC transposes (channel order is preserved end to end).
    xp = jnp.pad(x_nchw, ((0, 0), (0, 0), (r, r + (H_pad - H)), (r, r)))
    rows = jnp.arange(n_tiles)[:, None] * TH + jnp.arange(TH + 2 * r)[None, :]
    xt = xp[:, :, rows, :]                                  # (N,Cin,T,TH+2r,Wp)
    xt = jnp.transpose(xt, (0, 2, 1, 3, 4))                 # (N,T,Cin,TH+2r,Wp)
    xt = xt.reshape(N, n_tiles, Cin, (TH + 2 * r) * Wp)
    xt = jnp.pad(xt, ((0, 0), (0, 0), (0, 0), (0, Lin - (TH + 2 * r) * Wp)))
    xt = xt.astype(compute_dtype)

    # im2col-ordered weights: row = (kh*K + kw)*Cin + cin.
    w2 = jnp.transpose(weight, (0, 2, 3, 1)).reshape(Cout, K * K * Cin)
    w2 = w2.astype(compute_dtype)
    b2 = bias.reshape(Cout, 1).astype(jnp.float32)

    # Explicit VMEM budget: double-buffered in/out blocks + weights + scratch.
    est = (2 * Cin * Lin * in_itemsize
           + 2 * Cout * Lout * out_itemsize
           + 2 * (Cout * K * K * Cin * in_itemsize + Cout * 4)
           + K * K * Cin * Lout * in_itemsize)
    vmem_limit = int(min(32 * 1024 * 1024, max(8 * 1024 * 1024, 4 * est)))

    out = pl.pallas_call(
        functools.partial(_swconv_kernel, K=K, Wp=Wp, Lout=Lout),
        out_shape=jax.ShapeDtypeStruct((N, n_tiles, Cout, Lout), out_dtype),
        grid_spec=pltpu.PrefetchScalarGridSpec(
            num_scalar_prefetch=0,
            grid=(N, n_tiles),
            in_specs=[
                pl.BlockSpec((1, 1, Cin, Lin), lambda n, t: (n, t, 0, 0)),
                # Weight/bias index_maps are constant across the grid, so the
                # pipeline fetches them once.  They are ~1 KiB here, so the
                # default double buffer is negligible; pl.Buffered(1) is
                # deliberately not used to keep version compatibility.
                pl.BlockSpec((Cout, K * K * Cin), lambda n, t: (0, 0)),
                pl.BlockSpec((Cout, 1), lambda n, t: (0, 0)),
            ],
            out_specs=pl.BlockSpec((1, 1, Cout, Lout),
                                   lambda n, t: (n, t, 0, 0)),
            scratch_shapes=[pltpu.VMEM((K * K * Cin, Lout), compute_dtype)],
        ),
        compiler_params=pltpu.CompilerParams(
            dimension_semantics=("parallel", "parallel"),
            vmem_limit_bytes=vmem_limit,
        ),
    )(xt, w2, b2)

    # Un-flatten / un-pad in the wrapper (kernel stores stay lane-dense).
    out = out[..., :TH * Wp].reshape(N, n_tiles, Cout, TH, Wp)[..., :W]
    out = jnp.transpose(out, (0, 2, 1, 3, 4)).reshape(N, Cout, H_pad, W)
    return out[:, :, :H, :]


if __name__ == "__main__":
    # Small shapes consistent with the module's forward (NCHW conv input).
    N, Cin, Cout, H, W = 2, 4, 8, 16, 16
    kernel_size = 3

    key = jax.random.PRNGKey(0)
    kx, kw_, kb = jax.random.split(key, 3)

    x = jax.random.normal(kx, (N, Cin, H, W), dtype=jnp.float32)
    fan_in = Cin * kernel_size * kernel_size
    weight = jax.random.normal(
        kw_, (Cout, Cin, kernel_size, kernel_size), dtype=jnp.float32
    ) / jnp.sqrt(fan_in)
    bias = jax.random.normal(kb, (Cout,), dtype=jnp.float32) * 0.01

    # Reference: XLA conv with PyTorch cross-correlation semantics.
    r = kernel_size // 2
    ref = lax.conv_general_dilated(
        x, weight, window_strides=(1, 1), padding=[(r, r), (r, r)],
        dimension_numbers=("NCHW", "OIHW", "NCHW"),
    ) + bias[None, :, None, None]

    # 1) Default (f32 operands, single row tile at this size).
    out = jax.block_until_ready(
        swconv_pallas(x, weight, bias, kernel_size=kernel_size))
    assert out.shape == (N, Cout, H, W)
    assert jnp.allclose(out, ref, atol=1e-4, rtol=1e-4)

    # 2) Exercise the haloed row-tiling path (2 tiles of 8 rows).
    out_tiled = jax.block_until_ready(
        swconv_pallas(x, weight, bias, kernel_size=kernel_size, row_tile=8))
    assert jnp.allclose(out_tiled, ref, atol=1e-4, rtol=1e-4)

    # 3) bf16 MXU operands (f32 accumulation) — looser tolerance vs f32 ref.
    out_bf16 = jax.block_until_ready(
        swconv_pallas(x, weight, bias, kernel_size=kernel_size,
                      compute_dtype=jnp.bfloat16))
    assert jnp.allclose(out_bf16, ref, atol=5e-2, rtol=5e-2)

    print("KERNEL_OK")
</pallas_src>

<mosaic_0001>
module attributes {stable_mosaic.version = 11 : i64} {
  func.func @_swconv_kernel(%arg0: i32, %arg1: i32, %arg2: memref<1x1x4x512xf32, #tpu.memory_space<vmem>>, %arg3: memref<8x36xf32, #tpu.memory_space<vmem>>, %arg4: memref<8x1xf32, #tpu.memory_space<vmem>>, %arg5: memref<1x1x8x384xf32, #tpu.memory_space<vmem>>, %arg6: memref<36x384xf32, #tpu.memory_space<vmem>>) attributes {dimension_semantics = [#tpu.dimension_semantics<parallel>, #tpu.dimension_semantics<parallel>], iteration_bounds = array<i64: 2, 1>, scalar_prefetch = 0 : i64, scratch_operands = 1 : i64, tpu.core_type = #tpu.core_type<tc>, window_params = [{transform_indices = @transform_0, window_bounds = array<i64: 1, 1, 4, 512>}, {pipeline_mode = #tpu.pipeline_mode<synchronous>, transform_indices = @transform_1, window_bounds = array<i64: 8, 36>}, {pipeline_mode = #tpu.pipeline_mode<synchronous>, transform_indices = @transform_2, window_bounds = array<i64: 8, 1>}, {transform_indices = @transform_3, window_bounds = array<i64: 1, 1, 8, 384>}]} {
    %c0 = arith.constant 0 : index
    %c0_0 = arith.constant 0 : index
    %c0_1 = arith.constant 0 : index
    %c0_2 = arith.constant 0 : index
    %0 = vector.load %arg2[%c0, %c0_0, %c0_1, %c0_2] : memref<1x1x4x512xf32, #tpu.memory_space<vmem>>, vector<1x1x4x384xf32>
    %1 = vector.shape_cast %0 : vector<1x1x4x384xf32> to vector<4x384xf32>
    %c0_3 = arith.constant 0 : index
    %c0_4 = arith.constant 0 : index
    %2 = vector.load %arg6[%c0_3, %c0_4] : memref<36x384xf32, #tpu.memory_space<vmem>>, vector<4x384xf32>
    tpu.vector_store %arg6[%c0_3, %c0_4], %1 {strides = array<i32>} : memref<36x384xf32, #tpu.memory_space<vmem>>, vector<4x384xf32>,
    %c0_5 = arith.constant 0 : index
    %c0_6 = arith.constant 0 : index
    %c0_7 = arith.constant 0 : index
    %c1 = arith.constant 1 : index
    %3 = vector.load %arg2[%c0_5, %c0_6, %c0_7, %c1] : memref<1x1x4x512xf32, #tpu.memory_space<vmem>>, vector<1x1x4x384xf32>
    %4 = vector.shape_cast %3 : vector<1x1x4x384xf32> to vector<4x384xf32>
    %c4 = arith.constant 4 : index
    %c0_8 = arith.constant 0 : index
    %5 = vector.load %arg6[%c4, %c0_8] : memref<36x384xf32, #tpu.memory_space<vmem>>, vector<4x384xf32>
    tpu.vector_store %arg6[%c4, %c0_8], %4 {strides = array<i32>} : memref<36x384xf32, #tpu.memory_space<vmem>>, vector<4x384xf32>,
    %c0_9 = arith.constant 0 : index
    %c0_10 = arith.constant 0 : index
    %c0_11 = arith.constant 0 : index
    %c2 = arith.constant 2 : index
    %6 = vector.load %arg2[%c0_9, %c0_10, %c0_11, %c2] : memref<1x1x4x512xf32, #tpu.memory_space<vmem>>, vector<1x1x4x384xf32>
    %7 = vector.shape_cast %6 : vector<1x1x4x384xf32> to vector<4x384xf32>
    %c8 = arith.constant 8 : index
    %c0_12 = arith.constant 0 : index
    %8 = vector.load %arg6[%c8, %c0_12] : memref<36x384xf32, #tpu.memory_space<vmem>>, vector<4x384xf32>
    tpu.vector_store %arg6[%c8, %c0_12], %7 {strides = array<i32>} : memref<36x384xf32, #tpu.memory_space<vmem>>, vector<4x384xf32>,
    %c0_13 = arith.constant 0 : index
    %c0_14 = arith.constant 0 : index
    %c0_15 = arith.constant 0 : index
    %c18 = arith.constant 18 : index
    %9 = vector.load %arg2[%c0_13, %c0_14, %c0_15, %c18] : memref<1x1x4x512xf32, #tpu.memory_space<vmem>>, vector<1x1x4x384xf32>
    %10 = vector.shape_cast %9 : vector<1x1x4x384xf32> to vector<4x384xf32>
    %c12 = arith.constant 12 : index
    %c0_16 = arith.constant 0 : index
    %11 = vector.load %arg6[%c12, %c0_16] : memref<36x384xf32, #tpu.memory_space<vmem>>, vector<4x384xf32>
    tpu.vector_store %arg6[%c12, %c0_16], %10 {strides = array<i32>} : memref<36x384xf32, #tpu.memory_space<vmem>>, vector<4x384xf32>,
    %c0_17 = arith.constant 0 : index
    %c0_18 = arith.constant 0 : index
    %c0_19 = arith.constant 0 : index
    %c19 = arith.constant 19 : index
    %12 = vector.load %arg2[%c0_17, %c0_18, %c0_19, %c19] : memref<1x1x4x512xf32, #tpu.memory_space<vmem>>, vector<1x1x4x384xf32>
    %13 = vector.shape_cast %12 : vector<1x1x4x384xf32> to vector<4x384xf32>
    %c16 = arith.constant 16 : index
    %c0_20 = arith.constant 0 : index
    %14 = vector.load %arg6[%c16, %c0_20] : memref<36x384xf32, #tpu.memory_space<vmem>>, vector<4x384xf32>
    tpu.vector_store %arg6[%c16, %c0_20], %13 {strides = array<i32>} : memref<36x384xf32, #tpu.memory_space<vmem>>, vector<4x384xf32>,
    %c0_21 = arith.constant 0 : index
    %c0_22 = arith.constant 0 : index
    %c0_23 = arith.constant 0 : index
    %c20 = arith.constant 20 : index
    %15 = vector.load %arg2[%c0_21, %c0_22, %c0_23, %c20] : memref<1x1x4x512xf32, #tpu.memory_space<vmem>>, vector<1x1x4x384xf32>
    %16 = vector.shape_cast %15 : vector<1x1x4x384xf32> to vector<4x384xf32>
    %c20_24 = arith.constant 20 : index
    %c0_25 = arith.constant 0 : index
    %17 = vector.load %arg6[%c20_24, %c0_25] : memref<36x384xf32, #tpu.memory_space<vmem>>, vector<4x384xf32>
    tpu.vector_store %arg6[%c20_24, %c0_25], %16 {strides = array<i32>} : memref<36x384xf32, #tpu.memory_space<vmem>>, vector<4x384xf32>,
    %c0_26 = arith.constant 0 : index
    %c0_27 = arith.constant 0 : index
    %c0_28 = arith.constant 0 : index
    %c36 = arith.constant 36 : index
    %18 = vector.load %arg2[%c0_26, %c0_27, %c0_28, %c36] : memref<1x1x4x512xf32, #tpu.memory_space<vmem>>, vector<1x1x4x384xf32>
    %19 = vector.shape_cast %18 : vector<1x1x4x384xf32> to vector<4x384xf32>
    %c24 = arith.constant 24 : index
    %c0_29 = arith.constant 0 : index
    %20 = vector.load %arg6[%c24, %c0_29] : memref<36x384xf32, #tpu.memory_space<vmem>>, vector<4x384xf32>
    tpu.vector_store %arg6[%c24, %c0_29], %19 {strides = array<i32>} : memref<36x384xf32, #tpu.memory_space<vmem>>, vector<4x384xf32>,
    %c0_30 = arith.constant 0 : index
    %c0_31 = arith.constant 0 : index
    %c0_32 = arith.constant 0 : index
    %c37 = arith.constant 37 : index
    %21 = vector.load %arg2[%c0_30, %c0_31, %c0_32, %c37] : memref<1x1x4x512xf32, #tpu.memory_space<vmem>>, vector<1x1x4x384xf32>
    %22 = vector.shape_cast %21 : vector<1x1x4x384xf32> to vector<4x384xf32>
    %c28 = arith.constant 28 : index
    %c0_33 = arith.constant 0 : index
    %23 = vector.load %arg6[%c28, %c0_33] : memref<36x384xf32, #tpu.memory_space<vmem>>, vector<4x384xf32>
    tpu.vector_store %arg6[%c28, %c0_33], %22 {strides = array<i32>} : memref<36x384xf32, #tpu.memory_space<vmem>>, vector<4x384xf32>,
    %c0_34 = arith.constant 0 : index
    %c0_35 = arith.constant 0 : index
    %c0_36 = arith.constant 0 : index
    %c38 = arith.constant 38 : index
    %24 = vector.load %arg2[%c0_34, %c0_35, %c0_36, %c38] : memref<1x1x4x512xf32, #tpu.memory_space<vmem>>, vector<1x1x4x384xf32>
    %25 = vector.shape_cast %24 : vector<1x1x4x384xf32> to vector<4x384xf32>
    %c32 = arith.constant 32 : index
    %c0_37 = arith.constant 0 : index
    %26 = vector.load %arg6[%c32, %c0_37] : memref<36x384xf32, #tpu.memory_space<vmem>>, vector<4x384xf32>
    tpu.vector_store %arg6[%c32, %c0_37], %25 {strides = array<i32>} : memref<36x384xf32, #tpu.memory_space<vmem>>, vector<4x384xf32>,
    %c0_38 = arith.constant 0 : index
    %c0_39 = arith.constant 0 : index
    %27 = vector.load %arg3[%c0_38, %c0_39] : memref<8x36xf32, #tpu.memory_space<vmem>>, vector<8x36xf32>
    %c0_40 = arith.constant 0 : index
    %c0_41 = arith.constant 0 : index
    %28 = vector.load %arg6[%c0_40, %c0_41] : memref<36x384xf32, #tpu.memory_space<vmem>>, vector<36x384xf32>
    %cst = arith.constant dense<0.000000e+00> : vector<8x384xf32>
    %29 = tpu.matmul %27, %28, %cst {dimension_numbers = #tpu.dot_dimension_numbers<[1], [0], [0], [1], [0, 0, 1, 1], [], []>} : vector<8x36xf32>, vector<36x384xf32>, vector<8x384xf32> -> vector<8x384xf32>
    %c0_42 = arith.constant 0 : index
    %c0_43 = arith.constant 0 : index
    %30 = vector.load %arg4[%c0_42, %c0_43] : memref<8x1xf32, #tpu.memory_space<vmem>>, vector<8x1xf32>
    %31 = vector.broadcast %30 : vector<8x1xf32> to vector<8x384xf32>
    %32 = arith.addf %29, %31 : vector<8x384xf32>
    %c0_44 = arith.constant 0 : index
    %c0_45 = arith.constant 0 : index
    %c0_46 = arith.constant 0 : index
    %c0_47 = arith.constant 0 : index
    %33 = vector.load %arg5[%c0_44, %c0_45, %c0_46, %c0_47] : memref<1x1x8x384xf32, #tpu.memory_space<vmem>>, vector<1x1x8x384xf32>
    %34 = vector.shape_cast %33 : vector<1x1x8x384xf32> to vector<8x384xf32>
    %35 = vector.shape_cast %32 : vector<8x384xf32> to vector<1x1x8x384xf32>
    tpu.vector_store %arg5[%c0_44, %c0_45, %c0_46, %c0_47], %35 {strides = array<i32>} : memref<1x1x8x384xf32, #tpu.memory_space<vmem>>, vector<1x1x8x384xf32>,
    return
  }
  func.func @transform_0(%arg0: i32, %arg1: i32) -> (i32, i32, i32, i32) {
    %c0_i32 = arith.constant 0 : i32
    %c0_i32_0 = arith.constant 0 : i32
    %c0_i32_1 = arith.constant 0 : i32
    return %arg0, %arg1, %c0_i32, %c0_i32_0 : i32, i32, i32, i32
  }
  func.func @transform_1(%arg0: i32, %arg1: i32) -> (i32, i32) {
    %c0_i32 = arith.constant 0 : i32
    %c0_i32_0 = arith.constant 0 : i32
    %c0_i32_1 = arith.constant 0 : i32
    return %c0_i32, %c0_i32_0 : i32, i32
  }
  func.func @transform_2(%arg0: i32, %arg1: i32) -> (i32, i32) {
    %c0_i32 = arith.constant 0 : i32
    %c0_i32_0 = arith.constant 0 : i32
    %c0_i32_1 = arith.constant 0 : i32
    return %c0_i32, %c0_i32_0 : i32, i32
  }
  func.func @transform_3(%arg0: i32, %arg1: i32) -> (i32, i32, i32, i32) {
    %c0_i32 = arith.constant 0 : i32
    %c0_i32_0 = arith.constant 0 : i32
    %c0_i32_1 = arith.constant 0 : i32
    return %arg0, %arg1, %c0_i32, %c0_i32_0 : i32, i32, i32, i32
  }
}

</mosaic_0001>

<llo_original>
// kernel: swconv_pallas.1
$region0: #{swconv_pallas.1}
  #allocation0 [shape = 'u32[]', space=smem, size = 0x4, offset = 0x4, fixed_abs, tag = 'smem constant byte address 0x4 - core index']
  #allocation1 [shape = 'u32[144,128]{1,0:T(1,128)}', space=vmem, size = 0x12000, scoped, tag = 'internal scratch']
  #allocation2 [shape = 'f32[36,384]{1,0:T(8,128)}', space=vmem, size = 0xf000, scoped, tag = 'scratch operand']
  %s0 = inlined_call_operand.vmem [shape: f32[2,1,4,512], index: 0, kind: input, shape index: {}]
  %s1 = inlined_call_operand.vmem [shape: f32[8,36], index: 1, kind: input, shape index: {}]
  %s2 = inlined_call_operand.vmem [shape: f32[8,1], index: 2, kind: input, shape index: {}]
  %s3 = inlined_call_operand.vmem [shape: f32[2,1,8,384], index: 3, kind: output, shape index: {}]
  %s4 = sld [smem:[#allocation0]]
  $region45: #{swconv_pallas.1} parent=0
    _
  %s6 = ssub.s32 1, %s4
  %s7 = scalar_select 0, %s6, %s4
  loop: start=0, step=1, limit=4
  $region2: #{swconv_pallas.1} parent=0 // loop_pre_header
    _
  $region3: #{swconv_pallas.1} parent=0 // loop_header
    %s9 = sphi 0, %s13
    %p10 = scmp.ge.s32.totalorder %s9, 4
    %s16 = sphi 0, %s28
    %s17 = sphi 0, %s24
    %s18 = sphi 0, %s16
    %s19 = sphi 0, %s17
    %s20 = sphi 0, %s18
    %s21 = sphi 0, %s19
    %s33 = sphi 0, %s35
    %s36 = sphi 0, %s33
    %s37 = sphi 0, %s36
    %s53 = sphi 0, %s37
    %s57 = sphi 0, %s57
    %s59 = sphi 0, %s57
    %s60 = sphi 0, %s59
    %s74 = sphi 0, %s60
    %s78 = sphi 0, %s78
    %s80 = sphi 0, %s78
    %s81 = sphi 0, %s80
    %s95 = sphi 0, %s81
    %s103 = sphi 0, %s105
    %s106 = sphi 0, %s103
    %s107 = sphi 0, %s106
    %s123 = sphi 0, %s107
  $region4: #{swconv_pallas.1} parent=0 // loop_header_branch
    %12 = sbr.rel (%p10) target = $region8
  $region5: #{swconv_pallas.1} parent=0 // loop_body
    %s14 = ssub.s32 %s9, 1
    %s15 = ssub.s32 %s9, 2
    %s22 = sadd.s32 1, %s17
    %p23 = scmp.ge.s32.totalorder %s22, 1
    %s24 = scalar_select %p23, 0, %s22
    %s25 = sadd.s32 1, %s16
    %s26 = scalar_select %p23, %s25, %s16
    %p27 = scmp.ge.s32.totalorder %s26, 2
    %s28 = scalar_select %p27, 0, %s26
    %s29 = ssub.s32 %s16, %s28
    %s30 = ssub.s32 %s17, %s24
    %s31 = sor.u32 %s29, %s30
    %p32 = scmp.eq.s32.totalorder %s31, 0
    %s34 = sadd.s32 %s33, 1
    %s35 = scalar_select %p32, %s33, %s34
    %p38 = pneg %p32
    %p39 = scmp.eq.s32.totalorder %s9, 1
    %p40 = por %p38, %p39
    %p41 = scmp.ne.s32.totalorder %s33, %s36
    %p42 = scmp.eq.s32.totalorder %s9, 0
    %p43 = por %p41, %p42
    %p44 = scmp.ne.s32.totalorder %s33, %s36
    %p45 = scmp.eq.s32.totalorder %s14, 1
    %p46 = por %p44, %p45
    %p47 = scmp.ne.s32.totalorder %s36, %s37
    %p48 = scmp.eq.s32.totalorder %s14, 0
    %p49 = por %p47, %p48
    %p50 = scmp.ne.s32.totalorder %s36, %s37
    %p51 = scmp.eq.s32.totalorder %s15, 1
    %p52 = por %p50, %p51
    %p54 = scmp.ne.s32.totalorder %s37, %s53
    %p55 = scmp.eq.s32.totalorder %s15, 0
    %p56 = por %p54, %p55
    %s58 = sadd.s32 %s57, 1
    %p61 = scmp.eq.s32.totalorder %s9, 1
    %p62 = scmp.ne.s32.totalorder %s57, %s59
    %p63 = scmp.eq.s32.totalorder %s9, 0
    %p64 = por %p62, %p63
    %p65 = scmp.ne.s32.totalorder %s57, %s59
    %p66 = scmp.eq.s32.totalorder %s14, 1
    %p67 = por %p65, %p66
    %p68 = scmp.ne.s32.totalorder %s59, %s60
    %p69 = scmp.eq.s32.totalorder %s14, 0
    %p70 = por %p68, %p69
    %p71 = scmp.ne.s32.totalorder %s59, %s60
    %p72 = scmp.eq.s32.totalorder %s15, 1
    %p73 = por %p71, %p72
    %p75 = scmp.ne.s32.totalorder %s60, %s74
    %p76 = scmp.eq.s32.totalorder %s15, 0
    %p77 = por %p75, %p76
    %s79 = sadd.s32 %s78, 1
    %p82 = scmp.eq.s32.totalorder %s9, 1
    %p83 = scmp.ne.s32.totalorder %s78, %s80
    %p84 = scmp.eq.s32.totalorder %s9, 0
    %p85 = por %p83, %p84
    %p86 = scmp.ne.s32.totalorder %s78, %s80
    %p87 = scmp.eq.s32.totalorder %s14, 1
    %p88 = por %p86, %p87
    %p89 = scmp.ne.s32.totalorder %s80, %s81
    %p90 = scmp.eq.s32.totalorder %s14, 0
    %p91 = por %p89, %p90
    %p92 = scmp.ne.s32.totalorder %s80, %s81
    %p93 = scmp.eq.s32.totalorder %s15, 1
    %p94 = por %p92, %p93
    %p96 = scmp.ne.s32.totalorder %s81, %s95
    %p97 = scmp.eq.s32.totalorder %s15, 0
    %p98 = por %p96, %p97
    %s99 = ssub.s32 %s16, %s28
    %s100 = ssub.s32 %s17, %s24
    %s101 = sor.u32 %s99, %s100
    %p102 = scmp.eq.s32.totalorder %s101, 0
    %s104 = sadd.s32 %s103, 1
    %s105 = scalar_select %p102, %s103, %s104
    %p108 = pneg %p102
    %p109 = scmp.eq.s32.totalorder %s9, 1
    %p110 = por %p108, %p109
    %p111 = scmp.ne.s32.totalorder %s103, %s106
    %p112 = scmp.eq.s32.totalorder %s9, 0
    %p113 = por %p111, %p112
    %p114 = scmp.ne.s32.totalorder %s103, %s106
    %p115 = scmp.eq.s32.totalorder %s14, 1
    %p116 = por %p114, %p115
    %p117 = scmp.ne.s32.totalorder %s106, %s107
    %p118 = scmp.eq.s32.totalorder %s14, 0
    %p119 = por %p117, %p118
    %p120 = scmp.ne.s32.totalorder %s106, %s107
    %p121 = scmp.eq.s32.totalorder %s15, 1
    %p122 = por %p120, %p121
    %p124 = scmp.ne.s32.totalorder %s107, %s123
    %p125 = scmp.eq.s32.totalorder %s15, 0
    %p126 = por %p124, %p125
    %p127 = scmp.le.s32.totalorder 1, %s9
    %p128 = scmp.lt.s32.totalorder %s9, 3
    %p129 = pnand %p127, %p128
    %p130 = pneg %p129
    // Predicated region
    $region9: #{swconv_pallas.1} parent=5 // pred_check
      _
    $region10: #{swconv_pallas.1} parent=5 // pred_check_branch
      %132 = sbr.rel (%p129) target = $region12
    $region11: #{swconv_pallas.1} parent=5 // pred_region
      %s133 = ssub.s32 %s9, 1
      // Predicated region
      $region13: #{swconv_pallas.1} parent=11 // pred_check
        %p134 = pneg %p70
      $region14: #{swconv_pallas.1} parent=11 // pred_check_branch
        %136 = sbr.rel (%p134) target = $region16
      $region15: #{swconv_pallas.1} parent=11 // pred_region
        _
      $region16: #{swconv_pallas.1} parent=11 // pred_fallthru
        _
      // Predicated region
      $region17: #{swconv_pallas.1} parent=11 // pred_check
        %p137 = pneg %p91
      $region18: #{swconv_pallas.1} parent=11 // pred_check_branch
        %139 = sbr.rel (%p137) target = $region20
      $region19: #{swconv_pallas.1} parent=11 // pred_region
        _
      $region20: #{swconv_pallas.1} parent=11 // pred_fallthru
        _
    $region12: #{swconv_pallas.1} parent=5 // pred_fallthru
      _
    %p140 = scmp.lt.s32.totalorder %s9, 2
    // Predicated region
    $region21: #{swconv_pallas.1} parent=5 // pred_check
      %p141 = pneg %p140
    $region22: #{swconv_pallas.1} parent=5 // pred_check_branch
      %143 = sbr.rel (%p141) target = $region24
    $region23: #{swconv_pallas.1} parent=5 // pred_region
      // Predicated region
      $region25: #{swconv_pallas.1} parent=23 // pred_check
        %p144 = pneg %p43
      $region26: #{swconv_pallas.1} parent=23 // pred_check_branch
        %146 = sbr.rel (%p144) target = $region28
      $region27: #{swconv_pallas.1} parent=23 // pred_region
        %p147 = scmp.lt.s32.totalorder %s16, 1
        %s148 = scalar_select %p147, %s16, 1
        %p149 = scmp.lt.s32.totalorder %s17, 0
        %s150 = scalar_select %p149, %s17, 0
        %s151 = smul.addr %s150, 4
        %s152 = smul.addr %s148, 4
        %s153 = sadd.s32 %s151, %s152
        %s154 = smul.addr %s153, 4
        %s155 = scalar_lea.vmem %s0, %s154
      $region28: #{swconv_pallas.1} parent=23 // pred_fallthru
        _
    $region24: #{swconv_pallas.1} parent=5 // pred_fallthru
      _
    %p156 = scmp.le.s32.totalorder 1, %s9
    %p157 = scmp.lt.s32.totalorder %s9, 3
    %p158 = pnand %p156, %p157
    %p159 = pneg %p158
    // Predicated region
    $region29: #{swconv_pallas.1} parent=5 // pred_check
      _
    $region30: #{swconv_pallas.1} parent=5 // pred_check_branch
      %161 = sbr.rel (%p158) target = $region32
    $region31: #{swconv_pallas.1} parent=5 // pred_region
      %s162 = ssub.s32 %s9, 1
      %p163 = scmp.lt.s32.totalorder %s18, 1
      %s164 = scalar_select %p163, %s18, 1
      %p165 = scmp.lt.s32.totalorder %s19, 0
      %s166 = scalar_select %p165, %s19, 0
      %s167 = smul.addr %s166, 4
      %s168 = smul.addr %s164, 4
      %s169 = sadd.s32 %s167, %s168
      %s170 = smul.addr %s169, 4
      %s171 = scalar_lea.vmem %s0, %s170
      %p172 = pneg %p49
      %p173 = pneg %p46
      %p174 = pneg %p70
      %p175 = pneg %p67
      %p176 = pneg %p91
      %p177 = pneg %p88
      %p178 = pneg %p119
      %p179 = pneg %p116
      %p180 = scmp.lt.s32.totalorder %s18, 1
      %s181 = scalar_select %p180, %s18, 1
      %p182 = scmp.lt.s32.totalorder %s19, 0
      %s183 = scalar_select %p182, %s19, 0
      %s184 = smul.addr %s183, 3
      %s185 = smul.addr %s181, 3
      %s186 = sadd.s32 %s184, %s185
      %s187 = smul.addr %s186, 8
      %s188 = scalar_lea.vmem %s3, %s187
      %p189 = scmp.lt.s32.totalorder %s18, 1
      %s190 = scalar_select %p189, %s18, 1
      %p191 = scmp.lt.s32.totalorder %s19, 0
      %s192 = scalar_select %p191, %s19, 0
      %s193 = smul.addr %s192, 4
      %s194 = smul.addr %s190, 4
      %s195 = sadd.s32 %s193, %s194
      %s196 = smul.addr %s195, 4
      %s197 = scalar_lea.vmem %s0, %s196
      %p198 = scmp.lt.s32.totalorder %s18, 1
      %s199 = scalar_select %p198, %s18, 1
      %p200 = scmp.lt.s32.totalorder %s19, 0
      %s201 = scalar_select %p200, %s19, 0
      %s202 = smul.addr %s201, 3
      %s203 = smul.addr %s199, 3
      %s204 = sadd.s32 %s202, %s203
      %s205 = smul.addr %s204, 8
      %s206 = scalar_lea.vmem %s3, %s205
      %v207 = vld [vmem:[%s197] sm:$0xff]
      %v208 = vld [vmem:[%s197 + $0x8] sm:$0xf]
      %v210 = vcombine.high %v207, %v207
      %212 = vst [vmem:[#allocation2] sm:$0xf] %v207
      %213 = vst [vmem:[#allocation2 + $0x8] sm:$0xf] %v210
      %214 = vst [vmem:[#allocation2 + $0x10] sm:$0xf] %v208
      %v215 = vld [vmem:[%s197] sm:$0xff]
      %v216 = vld [vmem:[%s197 + $0x8] sm:$0xff]
      %v219 = vcombine.low %v215, %v215
      %v220 = vcombine.low %v216, %v216
      %221 = vrot.lane.b32.xlu0 %v219, 127
      %v222 = vpop.permute.xlu0 %221
      %223 = vrot.lane.b32.xlu0 %v215, 127
      %v224 = vpop.permute.xlu0 %223
      %225 = vrot.lane.b32.xlu0 %v220, 127
      %v226 = vpop.permute.xlu0 %225
      %227 = vrot.lane.b32.xlu0 %v216, 127
      %v228 = vpop.permute.xlu0 %227
      %vm229 = vcmask 1039360
      %v230 = vsel %vm229, %v222, %v224
      %v231 = vsel %vm229, %v224, %v226
      %v232 = vsel %vm229, %v226, %v228
      %236 = vst [vmem:[#allocation2] sm:$0xf0] %v230
      %237 = vst [vmem:[#allocation2 + $0x8] sm:$0xf0] %v231
      %238 = vst [vmem:[#allocation2 + $0x10] sm:$0xf0] %v232
      %v239 = vld [vmem:[%s197] sm:$0xff]
      %v240 = vld [vmem:[%s197 + $0x8] sm:$0xff]
      %v243 = vcombine.high %v239, %v239
      %v244 = vcombine.high %v240, %v240
      %245 = vrot.lane.b32.xlu0 %v239, 126
      %v246 = vpop.permute.xlu0 %245
      %247 = vrot.lane.b32.xlu0 %v243, 126
      %v248 = vpop.permute.xlu0 %247
      %249 = vrot.lane.b32.xlu0 %v240, 126
      %v250 = vpop.permute.xlu0 %249
      %251 = vrot.lane.b32.xlu0 %v244, 126
      %v252 = vpop.permute.xlu0 %251
      %vm253 = vcmask 1031168
      %v254 = vsel %vm253, %v246, %v248
      %v255 = vsel %vm253, %v248, %v250
      %v256 = vsel %vm253, %v250, %v252
      %260 = vst [vmem:[#allocation2 + $0x18] sm:$0xf] %v254
      %261 = vst [vmem:[#allocation2 + $0x20] sm:$0xf] %v255
      %262 = vst [vmem:[#allocation2 + $0x28] sm:$0xf] %v256
      %v263 = vld [vmem:[%s197] sm:$0xff]
      %v264 = vld [vmem:[%s197 + $0x8] sm:$0xff]
      %v267 = vcombine.low %v263, %v263
      %v268 = vcombine.low %v264, %v264
      %269 = vrot.lane.b32.xlu0 %v267, 110
      %v270 = vpop.permute.xlu0 %269
      %271 = vrot.lane.b32.xlu0 %v263, 110
      %v272 = vpop.permute.xlu0 %271
      %273 = vrot.lane.b32.xlu0 %v268, 110
      %v274 = vpop.permute.xlu0 %273
      %275 = vrot.lane.b32.xlu0 %v264, 110
      %v276 = vpop.permute.xlu0 %275
      %vm277 = vcmask 900096
      %v278 = vsel %vm277, %v270, %v272
      %v279 = vsel %vm277, %v272, %v274
      %v280 = vsel %vm277, %v274, %v276
      %284 = vst [vmem:[#allocation2 + $0x18] sm:$0xf0] %v278
      %285 = vst [vmem:[#allocation2 + $0x20] sm:$0xf0] %v279
      %286 = vst [vmem:[#allocation2 + $0x28] sm:$0xf0] %v280
      %v287 = vld [vmem:[%s197] sm:$0xff]
      %v288 = vld [vmem:[%s197 + $0x8] sm:$0xff]
      %v291 = vcombine.high %v287, %v287
      %v292 = vcombine.high %v288, %v288
      %293 = vrot.lane.b32.xlu0 %v287, 109
      %v294 = vpop.permute.xlu0 %293
      %295 = vrot.lane.b32.xlu0 %v291, 109
      %v296 = vpop.permute.xlu0 %295
      %297 = vrot.lane.b32.xlu0 %v288, 109
      %v298 = vpop.permute.xlu0 %297
      %299 = vrot.lane.b32.xlu0 %v292, 109
      %v300 = vpop.permute.xlu0 %299
      %vm301 = vcmask 891904
      %v302 = vsel %vm301, %v294, %v296
      %v303 = vsel %vm301, %v296, %v298
      %v304 = vsel %vm301, %v298, %v300
      %308 = vst [vmem:[#allocation2 + $0x30] sm:$0xf] %v302
      %309 = vst [vmem:[#allocation2 + $0x38] sm:$0xf] %v303
      %310 = vst [vmem:[#allocation2 + $0x40] sm:$0xf] %v304
      %v311 = vld [vmem:[%s197] sm:$0xff]
      %v312 = vld [vmem:[%s197 + $0x8] sm:$0xff]
      %v315 = vcombine.low %v311, %v311
      %v316 = vcombine.low %v312, %v312
      %317 = vrot.lane.b32.xlu0 %v315, 108
      %v318 = vpop.permute.xlu0 %317
      %319 = vrot.lane.b32.xlu0 %v311, 108
      %v320 = vpop.permute.xlu0 %319
      %321 = vrot.lane.b32.xlu0 %v316, 108
      %v322 = vpop.permute.xlu0 %321
      %323 = vrot.lane.b32.xlu0 %v312, 108
      %v324 = vpop.permute.xlu0 %323
      %vm325 = vcmask 883712
      %v326 = vsel %vm325, %v318, %v320
      %v327 = vsel %vm325, %v320, %v322
      %v328 = vsel %vm325, %v322, %v324
      %332 = vst [vmem:[#allocation2 + $0x30] sm:$0xf0] %v326
      %333 = vst [vmem:[#allocation2 + $0x38] sm:$0xf0] %v327
      %334 = vst [vmem:[#allocation2 + $0x40] sm:$0xf0] %v328
      %v335 = vld [vmem:[%s197] sm:$0xff]
      %v336 = vld [vmem:[%s197 + $0x8] sm:$0xff]
      %v339 = vcombine.high %v335, %v335
      %v340 = vcombine.high %v336, %v336
      %341 = vrot.lane.b32.xlu0 %v335, 92
      %v342 = vpop.permute.xlu0 %341
      %343 = vrot.lane.b32.xlu0 %v339, 92
      %v344 = vpop.permute.xlu0 %343
      %345 = vrot.lane.b32.xlu0 %v336, 92
      %v346 = vpop.permute.xlu0 %345
      %347 = vrot.lane.b32.xlu0 %v340, 92
      %v348 = vpop.permute.xlu0 %347
      %vm349 = vcmask 752640
      %v350 = vsel %vm349, %v342, %v344
      %v351 = vsel %vm349, %v344, %v346
      %v352 = vsel %vm349, %v346, %v348
      %356 = vst [vmem:[#allocation2 + $0x48] sm:$0xf] %v350
      %357 = vst [vmem:[#allocation2 + $0x50] sm:$0xf] %v351
      %358 = vst [vmem:[#allocation2 + $0x58] sm:$0xf] %v352
      %v359 = vld [vmem:[%s197] sm:$0xff]
      %v360 = vld [vmem:[%s197 + $0x8] sm:$0xff]
      %v363 = vcombine.low %v359, %v359
      %v364 = vcombine.low %v360, %v360
      %365 = vrot.lane.b32.xlu0 %v363, 91
      %v366 = vpop.permute.xlu0 %365
      %367 = vrot.lane.b32.xlu0 %v359, 91
      %v368 = vpop.permute.xlu0 %367
      %369 = vrot.lane.b32.xlu0 %v364, 91
      %v370 = vpop.permute.xlu0 %369
      %371 = vrot.lane.b32.xlu0 %v360, 91
      %v372 = vpop.permute.xlu0 %371
      %vm373 = vcmask 744448
      %v374 = vsel %vm373, %v366, %v368
      %v375 = vsel %vm373, %v368, %v370
      %v376 = vsel %vm373, %v370, %v372
      %380 = vst [vmem:[#allocation2 + $0x48] sm:$0xf0] %v374
      %381 = vst [vmem:[#allocation2 + $0x50] sm:$0xf0] %v375
      %382 = vst [vmem:[#allocation2 + $0x58] sm:$0xf0] %v376
      %v383 = vld [vmem:[%s197] sm:$0xff]
      %v384 = vld [vmem:[%s197 + $0x8] sm:$0xff]
      %v387 = vcombine.high %v383, %v383
      %v388 = vcombine.high %v384, %v384
      %389 = vrot.lane.b32.xlu0 %v383, 90
      %v390 = vpop.permute.xlu0 %389
      %391 = vrot.lane.b32.xlu0 %v387, 90
      %v392 = vpop.permute.xlu0 %391
      %393 = vrot.lane.b32.xlu0 %v384, 90
      %v394 = vpop.permute.xlu0 %393
      %395 = vrot.lane.b32.xlu0 %v388, 90
      %v396 = vpop.permute.xlu0 %395
      %vm397 = vcmask 736256
      %v398 = vsel %vm397, %v390, %v392
      %v399 = vsel %vm397, %v392, %v394
      %v400 = vsel %vm397, %v394, %v396
      %404 = vst [vmem:[#allocation2 + $0x60] sm:$0xf] %v398
      %405 = vst [vmem:[#allocation2 + $0x68] sm:$0xf] %v399
      %406 = vst [vmem:[#allocation2 + $0x70] sm:$0xf] %v400
      %v407 = vld [vmem:[%s1] sm:$0xff]
      %v408 = vld [vmem:[#allocation2] sm:$0xff]
      %v409 = vld [vmem:[#allocation2 + $0x8] sm:$0xff]
      %v410 = vld [vmem:[#allocation2 + $0x10] sm:$0xff]
      %v411 = vld [vmem:[#allocation2 + $0x18] sm:$0xff]
      %v412 = vld [vmem:[#allocation2 + $0x20] sm:$0xff]
      %v413 = vld [vmem:[#allocation2 + $0x28] sm:$0xff]
      %v414 = vld [vmem:[#allocation2 + $0x30] sm:$0xff]
      %v415 = vld [vmem:[#allocation2 + $0x38] sm:$0xff]
      %v416 = vld [vmem:[#allocation2 + $0x40] sm:$0xff]
      %v417 = vld [vmem:[#allocation2 + $0x48] sm:$0xff]
      %v418 = vld [vmem:[#allocation2 + $0x50] sm:$0xff]
      %v419 = vld [vmem:[#allocation2 + $0x58] sm:$0xff]
      %v420 = vld [vmem:[#allocation2 + $0x60] sm:$0xf]
      %v421 = vld [vmem:[#allocation2 + $0x68] sm:$0xf]
      %v422 = vld [vmem:[#allocation2 + $0x70] sm:$0xf]
      %v423 = vld [vmem:[%s2] sm:$0xff]
      %425 = vset.pattern.permute.xlu0 0
      %426 = vperm.xlu0 %425, %v423
      %v427 = vpop.permute.xlu0 %426
      %vm429 = vcmask 293888
      %v431 = vsel %vm429, %v407, 0
      %vm433 = vcmask 1043456
      %v435 = vsel %vm433, %v420, 0
      %v438 = vsel %vm433, %v421, 0
      %v441 = vsel %vm433, %v422, 0
      %443 = vmatprep.subr.mxu0 %v409
      %444 = vmatpush1.msra.mxu0 %v408
      %445 = vmatprep.subr.mxu0 %v412
      %446 = vmatpush1.msra.mxu0 %v411
      %447 = vmatprep.subr.mxu0 %v415
      %448 = vmatpush1.msra.mxu0 %v414
      %449 = vmatprep.subr.mxu0 %v418
      %450 = vmatpush1.msra.mxu0 %v417
      %451 = vmatprep.subr.mxu0 %v438
      %452 = vmatpush1.msra.mxu0 %v435
      %453 = vmatprep.subr.mxu0 0.0
      %454 = vmatpush1.msra.mxu0 0.0
      %455 = vmatprep.subr.mxu0 0.0
      %456 = vmatpush1.msra.mxu0 0.0
      %457 = vmatprep.subr.mxu0 0.0
      %458 = vmatpush1.msra.mxu0 0.0
      %459 = vmatprep.subr.mxu0 0.0
      %460 = vmatpush1.msra.mxu0 0.0
      %461 = vmatprep.subr.mxu0 0.0
      %462 = vmatpush1.msra.mxu0 0.0
      %463 = vmatprep.subr.mxu0 0.0
      %464 = vmatpush1.msra.mxu0 0.0
      %465 = vmatprep.subr.mxu0 0.0
      %466 = vmatpush1.msra.mxu0 0.0
      %467 = vmatprep.subr.mxu0 0.0
      %468 = vmatpush1.msra.mxu0 0.0
      %469 = vmatprep.subr.mxu0 0.0
      %470 = vmatpush1.msra.mxu0 0.0
      %471 = vmatprep.subr.mxu0 0.0
      %472 = vmatpush1.msra.mxu0 0.0
      %473 = vmatprep.subr.mxu0 0.0
      %474 = vmatpush1.msra.mxu0 0.0
      %475 = vmatprep.subr.mxu0 0.0
      %476 = vmatpush1.msra.mxu0 0.0
      %477 = vmatprep.subr.mxu0 0.0
      %478 = vmatpush1.msra.mxu0 0.0
      %479 = vmatprep.subr.mxu0 0.0
      %480 = vmatpush1.msra.mxu0 0.0
      %481 = vmatprep.subr.mxu0 0.0
      %482 = vmatpush1.msra.mxu0 0.0
      %483 = vmatprep.subr.mxu0 0.0
      %484 = vmatpush1.msra.mxu0 0.0
      %485 = vmatprep.subr.mxu0 0.0
      %486 = vmatpush1.msra.mxu0 0.0
      %487 = vmatprep.subr.mxu0 0.0
      %488 = vmatpush1.msra.mxu0 0.0
      %489 = vmatprep.subr.mxu0 0.0
      %490 = vmatpush1.msra.mxu0 0.0
      %491 = vmatprep.subr.mxu0 0.0
      %492 = vmatpush1.msra.mxu0 0.0
      %493 = vmatprep.subr.mxu0 0.0
      %494 = vmatpush1.msra.mxu0 0.0
      %495 = vmatprep.subr.mxu0 0.0
      %496 = vmatpush1.msra.mxu0 0.0
      %497 = vmatprep.subr.mxu0 0.0
      %498 = vmatpush1.msra.mxu0 0.0
      %499 = vmatprep.subr.mxu0 0.0
      %500 = vmatpush1.msra.mxu0 0.0
      %501 = vmatprep.subr.mxu0 0.0
      %502 = vmatpush1.msra.mxu0 0.0
      %503 = vmatprep.subr.mxu0 0.0
      %504 = vmatpush1.msra.mxu0 0.0
      %505 = vmatprep.subr.mxu0 0.0
      %506 = vmatpush1.msra.mxu0 0.0
      %507 = vmatprep.mubr.f32.mxu0 0.0
      %508 = vmatmul.mubr.f32.gmra.mrb[0].mxu0 %v431
      %v509 = vpop.f32.mrb[0].mxu0
      %v510 = vadd.f32 %v427, %v509
      %v511 = vpop.f32.mrb[0].mxu0
      %v512 = vadd.f32 %v427, %v511
      %513 = vdwg.mxu0
      %514 = vmatprep.subr.mxu0 0.0
      %515 = vmatpush1.msra.mxu0 %v410
      %516 = vmatprep.subr.mxu0 0.0
      %517 = vmatpush1.msra.mxu0 %v413
      %518 = vmatprep.subr.mxu0 0.0
      %519 = vmatpush1.msra.mxu0 %v416
      %520 = vmatprep.subr.mxu0 0.0
      %521 = vmatpush1.msra.mxu0 %v419
      %522 = vmatprep.subr.mxu0 0.0
      %523 = vmatpush1.msra.mxu0 %v441
      %524 = vmatprep.subr.mxu0 0.0
      %525 = vmatpush1.msra.mxu0 0.0
      %526 = vmatprep.subr.mxu0 0.0
      %527 = vmatpush1.msra.mxu0 0.0
      %528 = vmatprep.subr.mxu0 0.0
      %529 = vmatpush1.msra.mxu0 0.0
      %530 = vmatprep.subr.mxu0 0.0
      %531 = vmatpush1.msra.mxu0 0.0
      %532 = vmatprep.subr.mxu0 0.0
      %533 = vmatpush1.msra.mxu0 0.0
      %534 = vmatprep.subr.mxu0 0.0
      %535 = vmatpush1.msra.mxu0 0.0
      %536 = vmatprep.subr.mxu0 0.0
      %537 = vmatpush1.msra.mxu0 0.0
      %538 = vmatprep.subr.mxu0 0.0
      %539 = vmatpush1.msra.mxu0 0.0
      %540 = vmatprep.subr.mxu0 0.0
      %541 = vmatpush1.msra.mxu0 0.0
      %542 = vmatprep.subr.mxu0 0.0
      %543 = vmatpush1.msra.mxu0 0.0
      %544 = vmatprep.subr.mxu0 0.0
      %545 = vmatpush1.msra.mxu0 0.0
      %546 = vmatprep.subr.mxu0 0.0
      %547 = vmatpush1.msra.mxu0 0.0
      %548 = vmatprep.subr.mxu0 0.0
      %549 = vmatpush1.msra.mxu0 0.0
      %550 = vmatprep.subr.mxu0 0.0
      %551 = vmatpush1.msra.mxu0 0.0
      %552 = vmatprep.subr.mxu0 0.0
      %553 = vmatpush1.msra.mxu0 0.0
      %554 = vmatprep.subr.mxu0 0.0
      %555 = vmatpush1.msra.mxu0 0.0
      %556 = vmatprep.subr.mxu0 0.0
      %557 = vmatpush1.msra.mxu0 0.0
      %558 = vmatprep.subr.mxu0 0.0
      %559 = vmatpush1.msra.mxu0 0.0
      %560 = vmatprep.subr.mxu0 0.0
      %561 = vmatpush1.msra.mxu0 0.0
      %562 = vmatprep.subr.mxu0 0.0
      %563 = vmatpush1.msra.mxu0 0.0
      %564 = vmatprep.subr.mxu0 0.0
      %565 = vmatpush1.msra.mxu0 0.0
      %566 = vmatprep.subr.mxu0 0.0
      %567 = vmatpush1.msra.mxu0 0.0
      %568 = vmatprep.subr.mxu0 0.0
      %569 = vmatpush1.msra.mxu0 0.0
      %570 = vmatprep.subr.mxu0 0.0
      %571 = vmatpush1.msra.mxu0 0.0
      %572 = vmatprep.subr.mxu0 0.0
      %573 = vmatpush1.msra.mxu0 0.0
      %574 = vmatprep.subr.mxu0 0.0
      %575 = vmatpush1.msra.mxu0 0.0
      %576 = vmatprep.subr.mxu0 0.0
      %577 = vmatpush1.msra.mxu0 0.0
      %578 = vmatprep.mubr.f32.mxu0 0.0
      %579 = vmatmul.mubr.f32.gmra.mrb[0].mxu0 %v431
      %v580 = vpop.f32.mrb[0].mxu0
      %v581 = vadd.f32 %v427, %v580
      %v582 = vpop.f32.mrb[0].mxu0
      %583 = vdwg.mxu0
      %584 = vst [vmem:[%s206] sm:$0xff] %v510
      %585 = vst [vmem:[%s206 + $0x8] sm:$0xff] %v512
      %586 = vst [vmem:[%s206 + $0x10] sm:$0xff] %v581
      %p587 = scmp.lt.s32.totalorder %s18, 1
      %s588 = scalar_select %p587, %s18, 1
      %p589 = scmp.lt.s32.totalorder %s19, 0
      %s590 = scalar_select %p589, %s19, 0
      %s591 = smul.addr %s590, 3
      %s592 = smul.addr %s588, 3
      %s593 = sadd.s32 %s591, %s592
      %s594 = smul.addr %s593, 8
      %s595 = scalar_lea.vmem %s3, %s594
      // Predicated region
      $region33: #{swconv_pallas.1} parent=31 // pred_check
        %p596 = pneg %p116
      $region34: #{swconv_pallas.1} parent=31 // pred_check_branch
        %598 = sbr.rel (%p596) target = $region36
      $region35: #{swconv_pallas.1} parent=31 // pred_region
        _
      $region36: #{swconv_pallas.1} parent=31 // pred_fallthru
        _
    $region32: #{swconv_pallas.1} parent=5 // pred_fallthru
      _
    %p599 = scmp.le.s32.totalorder 2, %s9
    // Predicated region
    $region37: #{swconv_pallas.1} parent=5 // pred_check
      %p600 = pneg %p599
    $region38: #{swconv_pallas.1} parent=5 // pred_check_branch
      %602 = sbr.rel (%p600) target = $region40
    $region39: #{swconv_pallas.1} parent=5 // pred_region
      %s603 = ssub.s32 %s9, 2
      // Predicated region
      $region41: #{swconv_pallas.1} parent=39 // pred_check
        %p604 = pneg %p122
      $region42: #{swconv_pallas.1} parent=39 // pred_check_branch
        %606 = sbr.rel (%p604) target = $region44
      $region43: #{swconv_pallas.1} parent=39 // pred_region
        %p607 = scmp.lt.s32.totalorder %s20, 1
        %s608 = scalar_select %p607, %s20, 1
        %p609 = scmp.lt.s32.totalorder %s21, 0
        %s610 = scalar_select %p609, %s21, 0
        %s611 = smul.addr %s610, 3
        %s612 = smul.addr %s608, 3
        %s613 = sadd.s32 %s611, %s612
        %s614 = smul.addr %s613, 8
        %s615 = scalar_lea.vmem %s3, %s614
      $region44: #{swconv_pallas.1} parent=39 // pred_fallthru
        _
    $region40: #{swconv_pallas.1} parent=5 // pred_fallthru
      _
  $region6: #{swconv_pallas.1} parent=0 // loop_footer
    %s13 = sadd.s32 1, %s9
  $region7: #{swconv_pallas.1} parent=0 // loop_footer_branch
    %8 = sbr.rel target = $region3
  $region8: #{swconv_pallas.1} parent=0 // loop_exit
    _

</llo_original>
